<compile_context>
chip_gen: v6e
topology: v6e:2x2x1
jax: 0.10.0
libtpu: 0.0.40
codegen_flags: <defaults>
</compile_context>

<pallas_src>
import jax
import jax.numpy as jnp
from jax import lax
from jax.experimental import pallas as pl
from jax.experimental.pallas import tpu as pltpu


def _classifier_kernel(x_ref, w_ref, b_ref, scores_ref, logp_ref):
    # x_ref: (B, S, H)  w_ref: (L, H)  b_ref: (1, L)
    head = x_ref[:, 0, :]                       # fused head-token slice, (B, H)
    w = w_ref[...]                              # (L, H) — native nn.Linear layout
    b = b_ref[...]                              # (1, L)

    # scores = head @ W^T + b, contracting over H on the MXU with f32 accumulate.
    scores = lax.dot_general(
        head, w,
        dimension_numbers=(((1,), (1,)), ((), ())),
        preferred_element_type=jnp.float32,
    ) + b                                       # (B, L)

    # Numerically stable LogSoftmax over the label axis.
    m = jnp.max(scores, axis=-1, keepdims=True)
    lse = m + jnp.log(jnp.sum(jnp.exp(scores - m), axis=-1, keepdims=True))
    log_p = scores - lse

    scores_ref[...] = scores
    logp_ref[...] = log_p


def linear_classifier_forward(concated, weight, bias):
    """concated: (B, S, H); weight: (L, H) [PyTorch nn.Linear layout]; bias: (L,).
    Returns (log_p, scores), both (B, L) f32. `scores` mirrors shared.y_scores."""
    B, S, H = concated.shape
    L = weight.shape[0]

    b2d = bias.reshape(1, L)  # metadata-only reshape (no HBM round trip)

    scores, log_p = pl.pallas_call(
        _classifier_kernel,
        out_shape=(
            jax.ShapeDtypeStruct((B, L), jnp.float32),  # scores
            jax.ShapeDtypeStruct((B, L), jnp.float32),  # log_p
        ),
        # Gridless: whole arrays resident in VMEM for a single kernel invocation.
        in_specs=[
            pl.BlockSpec(memory_space=pltpu.MemorySpace.VMEM),
            pl.BlockSpec(memory_space=pltpu.MemorySpace.VMEM),
            pl.BlockSpec(memory_space=pltpu.MemorySpace.VMEM),
        ],
        out_specs=(
            pl.BlockSpec(memory_space=pltpu.MemorySpace.VMEM),
            pl.BlockSpec(memory_space=pltpu.MemorySpace.VMEM),
        ),
    )(concated, weight, b2d)

    return log_p, scores


if __name__ == "__main__":
    # Small shapes consistent with the module: batch=2, seq=8, hidden=32, num_label=8
    B, S, H, L = 2, 8, 32, 8

    key = jax.random.PRNGKey(0)
    k_x, k_w, k_b = jax.random.split(key, 3)

    concated = jax.random.normal(k_x, (B, S, H), dtype=jnp.float32)
    # Deterministic nn.Linear-style params (uniform in [-1/sqrt(H), 1/sqrt(H)])
    bound = 1.0 / (H ** 0.5)
    weight = jax.random.uniform(k_w, (L, H), minval=-bound, maxval=bound, dtype=jnp.float32)
    bias = jax.random.uniform(k_b, (L,), minval=-bound, maxval=bound, dtype=jnp.float32)

    log_p, scores = linear_classifier_forward(concated, weight, bias)
    jax.block_until_ready((log_p, scores))

    # Reference in plain JAX
    ref_scores = concated[:, 0, :] @ weight.T + bias
    ref_logp = jax.nn.log_softmax(ref_scores, axis=1)
    assert jnp.allclose(scores, ref_scores, atol=1e-5), "scores mismatch"
    assert jnp.allclose(log_p, ref_logp, atol=1e-5), "log_softmax mismatch"

    print("KERNEL_OK")
</pallas_src>

<mosaic_0001>
module attributes {stable_mosaic.version = 11 : i64} {
  func.func @_classifier_kernel(%arg0: memref<2x8x32xf32, #tpu.memory_space<vmem>>, %arg1: memref<8x32xf32, #tpu.memory_space<vmem>>, %arg2: memref<1x8xf32, #tpu.memory_space<vmem>>, %arg3: memref<2x8xf32, #tpu.memory_space<vmem>>, %arg4: memref<2x8xf32, #tpu.memory_space<vmem>>) attributes {dimension_semantics = [], scalar_prefetch = 0 : i64, scratch_operands = 0 : i64, tpu.core_type = #tpu.core_type<tc>} {
    %c0 = arith.constant 0 : index
    %c0_0 = arith.constant 0 : index
    %c0_1 = arith.constant 0 : index
    %0 = vector.load %arg0[%c0, %c0_0, %c0_1] : memref<2x8x32xf32, #tpu.memory_space<vmem>>, vector<2x1x32xf32>
    %1 = vector.shape_cast %0 : vector<2x1x32xf32> to vector<2x32xf32>
    %c0_2 = arith.constant 0 : index
    %c0_3 = arith.constant 0 : index
    %2 = vector.load %arg1[%c0_2, %c0_3] : memref<8x32xf32, #tpu.memory_space<vmem>>, vector<8x32xf32>
    %c0_4 = arith.constant 0 : index
    %c0_5 = arith.constant 0 : index
    %3 = vector.load %arg2[%c0_4, %c0_5] : memref<1x8xf32, #tpu.memory_space<vmem>>, vector<1x8xf32>
    %cst = arith.constant dense<0.000000e+00> : vector<2x8xf32>
    %4 = tpu.matmul %1, %2, %cst {dimension_numbers = #tpu.dot_dimension_numbers<[1], [1], [0], [0], [0, 0, 1, 0], [], []>} : vector<2x32xf32>, vector<8x32xf32>, vector<2x8xf32> -> vector<2x8xf32>
    %5 = vector.broadcast %3 : vector<1x8xf32> to vector<2x8xf32>
    %6 = arith.addf %4, %5 : vector<2x8xf32>
    %cst_6 = arith.constant dense<0xFF800000> : vector<2xf32>
    %7 = vector.multi_reduction <maximumf>, %6, %cst_6 [1] : vector<2x8xf32> to vector<2xf32>
    %8 = vector.shape_cast %7 : vector<2xf32> to vector<2x1xf32>
    %9 = vector.broadcast %8 : vector<2x1xf32> to vector<2x8xf32>
    %10 = arith.subf %6, %9 : vector<2x8xf32>
    %11 = math.exp %10 : vector<2x8xf32>
    %cst_7 = arith.constant dense<0.000000e+00> : vector<2xf32>
    %12 = vector.multi_reduction <add>, %11, %cst_7 [1] : vector<2x8xf32> to vector<2xf32>
    %13 = vector.shape_cast %12 : vector<2xf32> to vector<2x1xf32>
    %14 = math.log %13 : vector<2x1xf32>
    %15 = arith.addf %8, %14 : vector<2x1xf32>
    %16 = vector.broadcast %15 : vector<2x1xf32> to vector<2x8xf32>
    %17 = arith.subf %6, %16 : vector<2x8xf32>
    %c0_8 = arith.constant 0 : index
    %c0_9 = arith.constant 0 : index
    %18 = vector.load %arg3[%c0_8, %c0_9] : memref<2x8xf32, #tpu.memory_space<vmem>>, vector<2x8xf32>
    tpu.vector_store %arg3[%c0_8, %c0_9], %6 {strides = array<i32>} : memref<2x8xf32, #tpu.memory_space<vmem>>, vector<2x8xf32>,
    %c0_10 = arith.constant 0 : index
    %c0_11 = arith.constant 0 : index
    %19 = vector.load %arg4[%c0_10, %c0_11] : memref<2x8xf32, #tpu.memory_space<vmem>>, vector<2x8xf32>
    tpu.vector_store %arg4[%c0_10, %c0_11], %17 {strides = array<i32>} : memref<2x8xf32, #tpu.memory_space<vmem>>, vector<2x8xf32>,
    return
  }
}

</mosaic_0001>

<llo_original>
// kernel: tpu_custom_call.1
$region0: #{tpu_custom_call.1}
  #allocation0 [shape = 'u32[]', space=smem, size = 0x4, offset = 0x4, fixed_abs, tag = 'smem constant byte address 0x4 - core index']
  #allocation1 [shape = 'u32[144,128]{1,0:T(1,128)}', space=vmem, size = 0x12000, scoped, tag = 'internal scratch']
  %s0 = inlined_call_operand.hbm [shape: f32[2,8,32], index: 0, kind: input, shape index: {}]
  %s1 = inlined_call_operand.hbm [shape: f32[8,32], index: 1, kind: input, shape index: {}]
  %s2 = inlined_call_operand.vmem [shape: f32[1,8], index: 2, kind: input, shape index: {}]
  %s3 = inlined_call_operand.hbm [shape: f32[2,8], index: 3, kind: output, shape index: {0}]
  %s4 = inlined_call_operand.hbm [shape: f32[2,8], index: 4, kind: output, shape index: {1}]
  %5 = xla_tuple %s3, %s4
  %s6 = sld [smem:[#allocation0]]
  $region38: #{tpu_custom_call.1} parent=0
    _
  %s8 = ssub.s32 1, %s6
  %s9 = scalar_select 0, %s8, %s6
  $region1: #{tpu_custom_call.1} parent=0
    #allocation2 [shape = 'u8[8192]{0}', space=vmem, size = 0x2000, scoped, tag = 'input window, operand 0, single buffered']
    #allocation3 [shape = 's32[1]{0}', space=sflag, size = 0x4, scoped, tag = 'scoped memory for tpu_custom_call.1']
    #allocation4 [shape = 's32[1]{0}', space=sflag, size = 0x4, scoped, tag = 'scoped memory for tpu_custom_call.1']
    #allocation5 [shape = 'u8[4096]{0}', space=vmem, size = 0x1000, scoped, tag = 'input window, operand 1, single buffered']
    #allocation6 [shape = 's32[1]{0}', space=sflag, size = 0x4, scoped, tag = 'scoped memory for tpu_custom_call.1']
    #allocation7 [shape = 'u8[1024]{0}', space=vmem, size = 0x400, scoped, tag = 'output window, operand 0, single buffered']
    #allocation8 [shape = 'u8[1024]{0}', space=vmem, size = 0x400, scoped, tag = 'output window, operand 1, single buffered']
    #allocation9 [shape = 's32[1]{0}', space=sflag, size = 0x4, scoped, tag = 'scoped memory for tpu_custom_call.1']
    %10 = vsyncpa [#allocation3], 0
    %11 = vsyncpa [#allocation6], 0
    %12 = vsyncpa [#allocation4], 0
    %13 = vsyncpa [#allocation9], 0
    // Predicated region
    $region2: #{tpu_custom_call.1} parent=1 // pred_check
      _
    $region3: #{tpu_custom_call.1} parent=1 // pred_check_branch
      %15 = sbr.rel (0) target = $region5
    $region4: #{tpu_custom_call.1} parent=1 // pred_region
      %s17 = ssub.s32 256, 256
      %18 = vsyncadd [#allocation3], %s17
      %s19 = sshll.u32 [#allocation2], 4
      %s20 = int_to_ptr.vmem [resolvable:$true] %s19
      %25 = dma.hbm_to_vmem [thread:$0]  %s0, 256, %s20, [#allocation3], 128, 128, 8
    $region5: #{tpu_custom_call.1} parent=1 // pred_fallthru
      _
    // Predicated region
    $region6: #{tpu_custom_call.1} parent=1 // pred_check
      _
    $region7: #{tpu_custom_call.1} parent=1 // pred_check_branch
      %27 = sbr.rel (0) target = $region9
    $region8: #{tpu_custom_call.1} parent=1 // pred_region
      %s29 = ssub.s32 128, 128
      %30 = vsyncadd [#allocation6], %s29
      %s32 = sshll.u32 [#allocation5], 4
      %s33 = int_to_ptr.vmem [resolvable:$true] %s32
      %35 = dma.hbm_to_vmem [thread:$0]  %s1, 128, %s33, [#allocation6]
    $region9: #{tpu_custom_call.1} parent=1 // pred_fallthru
      _
    // Predicated region
    $region10: #{tpu_custom_call.1} parent=1 // pred_check
      _
    $region11: #{tpu_custom_call.1} parent=1 // pred_check_branch
      %37 = sbr.rel (0) target = $region13
    $region12: #{tpu_custom_call.1} parent=1 // pred_region
      _
    $region13: #{tpu_custom_call.1} parent=1 // pred_fallthru
      _
    // Predicated region
    $region14: #{tpu_custom_call.1} parent=1 // pred_check
      _
    $region15: #{tpu_custom_call.1} parent=1 // pred_check_branch
      %39 = sbr.rel (0) target = $region17
    $region16: #{tpu_custom_call.1} parent=1 // pred_region
      %40 = dma.done [#allocation3], 256
    $region17: #{tpu_custom_call.1} parent=1 // pred_fallthru
      _
    // Predicated region
    $region18: #{tpu_custom_call.1} parent=1 // pred_check
      _
    $region19: #{tpu_custom_call.1} parent=1 // pred_check_branch
      %42 = sbr.rel (0) target = $region21
    $region20: #{tpu_custom_call.1} parent=1 // pred_region
      %43 = dma.done [#allocation6], 128
    $region21: #{tpu_custom_call.1} parent=1 // pred_fallthru
      _
    %v44 = vld [vmem:[#allocation2] sm:$0x1]
    %v45 = vld [vmem:[#allocation2 + $0x8] sm:$0x1]
    %v46 = vld [vmem:[#allocation5] sm:$0xff]
    %v47 = vld [vmem:[%s2] sm:$0x1]
    %v49 = vlaneseq
    %v50 = vshrl.u32 %v49, 7
    %v51 = vsub.s32 0, %v50
    %v52 = vrot.slane %v47, %v51
    %v56 = vrot.slane %v45, 7
    %vm57 = vcmask 1041409
    %v58 = vsel %vm57, %v56, %v44
    %vm59 = vcmask 261120
    %v60 = vsel %vm59, %v58, 0
    %v63 = vsel %vm59, %v46, 0
    %65 = vmatprep.subr.mxu0 0.0
    %66 = vmatpush1.xpose.msra.mxu0 0.0
    %67 = vmatprep.subr.mxu0 0.0
    %68 = vmatpush1.xpose.msra.mxu0 0.0
    %69 = vmatprep.subr.mxu0 0.0
    %70 = vmatpush1.xpose.msra.mxu0 0.0
    %71 = vmatprep.subr.mxu0 0.0
    %72 = vmatpush1.xpose.msra.mxu0 0.0
    %73 = vmatprep.subr.mxu0 0.0
    %74 = vmatpush1.xpose.msra.mxu0 0.0
    %75 = vmatprep.subr.mxu0 0.0
    %76 = vmatpush1.xpose.msra.mxu0 0.0
    %77 = vmatprep.subr.mxu0 0.0
    %78 = vmatpush1.xpose.msra.mxu0 0.0
    %79 = vmatprep.subr.mxu0 0.0
    %80 = vmatpush1.xpose.msra.mxu0 0.0
    %81 = vmatprep.subr.mxu0 0.0
    %82 = vmatpush1.xpose.msra.mxu0 0.0
    %83 = vmatprep.subr.mxu0 0.0
    %84 = vmatpush1.xpose.msra.mxu0 0.0
    %85 = vmatprep.subr.mxu0 0.0
    %86 = vmatpush1.xpose.msra.mxu0 0.0
    %87 = vmatprep.subr.mxu0 0.0
    %88 = vmatpush1.xpose.msra.mxu0 0.0
    %89 = vmatprep.subr.mxu0 0.0
    %90 = vmatpush1.xpose.msra.mxu0 0.0
    %91 = vmatprep.subr.mxu0 0.0
    %92 = vmatpush1.xpose.msra.mxu0 0.0
    %93 = vmatprep.subr.mxu0 0.0
    %94 = vmatpush1.xpose.msra.mxu0 0.0
    %95 = vmatprep.subr.mxu0 0.0
    %96 = vmatpush1.xpose.msra.mxu0 %v63
    %97 = vmatprep.subr.mxu0 0.0
    %98 = vmatpush2.xpose.msra.mxu0 0.0
    %99 = vmatprep.subr.mxu0 0.0
    %100 = vmatpush2.xpose.msra.mxu0 0.0
    %101 = vmatprep.subr.mxu0 0.0
    %102 = vmatpush2.xpose.msra.mxu0 0.0
    %103 = vmatprep.subr.mxu0 0.0
    %104 = vmatpush2.xpose.msra.mxu0 0.0
    %105 = vmatprep.subr.mxu0 0.0
    %106 = vmatpush2.xpose.msra.mxu0 0.0
    %107 = vmatprep.subr.mxu0 0.0
    %108 = vmatpush2.xpose.msra.mxu0 0.0
    %109 = vmatprep.subr.mxu0 0.0
    %110 = vmatpush2.xpose.msra.mxu0 0.0
    %111 = vmatprep.subr.mxu0 0.0
    %112 = vmatpush2.xpose.msra.mxu0 0.0
    %113 = vmatprep.subr.mxu0 0.0
    %114 = vmatpush2.xpose.msra.mxu0 0.0
    %115 = vmatprep.subr.mxu0 0.0
    %116 = vmatpush2.xpose.msra.mxu0 0.0
    %117 = vmatprep.subr.mxu0 0.0
    %118 = vmatpush2.xpose.msra.mxu0 0.0
    %119 = vmatprep.subr.mxu0 0.0
    %120 = vmatpush2.xpose.msra.mxu0 0.0
    %121 = vmatprep.subr.mxu0 0.0
    %122 = vmatpush2.xpose.msra.mxu0 0.0
    %123 = vmatprep.subr.mxu0 0.0
    %124 = vmatpush2.xpose.msra.mxu0 0.0
    %125 = vmatprep.subr.mxu0 0.0
    %126 = vmatpush2.xpose.msra.mxu0 0.0
    %127 = vmatprep.subr.mxu0 0.0
    %128 = vmatpush2.xpose.msra.mxu0 0.0
    %129 = vmatprep.mubr.f32.mxu0 0.0
    %130 = vmatmul.mubr.f32.gmra.mxu0 %v60
    %v131 = vpop.f32.mrf.mxu0
    %v132 = vadd.f32 %v52, %v131
    %v133 = vpop.f32.mrf.mxu0
    %134 = vdwg.mxu0
    %vm135 = vcmask 58368
    %v136 = vsel %vm135, %v132, -inf
    %137 = vmax.xlane.f32.xlu0 %v136
    %v138 = vpop.xlane.xlu0 %137
    %v139 = vsub.f32 %v132, %v138
    %v140 = vmul.f32 %v139, 1.442695
    %v141 = vpow.pop %v140
    %v142 = vsel %vm135, %v141, 0.0
    %143 = vadd.xlane.f32.xlu0 %v142
    %v144 = vpop.xlane.xlu0 %143
    %v145 = vlog2.pop %v144
    %v146 = vmul.f32 %v145, 0.6931472
    %v147 = vadd.f32 %v138, %v146
    %v148 = vsub.f32 %v132, %v147
    %149 = vst.msk [vmem:[#allocation7] sm:$0x3] %vm135, %v132
    %150 = vst.msk [vmem:[#allocation8] sm:$0x3] %vm135, %v148
    // Predicated region
    $region22: #{tpu_custom_call.1} parent=1 // pred_check
      _
    $region23: #{tpu_custom_call.1} parent=1 // pred_check_branch
      %152 = sbr.rel (0) target = $region25
    $region24: #{tpu_custom_call.1} parent=1 // pred_region
      %s154 = ssub.s32 32, 32
      %155 = vsyncadd [#allocation4], %s154
      %s157 = sshll.u32 [#allocation7], 4
      %s158 = int_to_ptr.vmem [resolvable:$true] %s157
      %160 = dma.vmem_to_hbm [thread:$0]  %s158, 32, %s3, [#allocation4]
    $region25: #{tpu_custom_call.1} parent=1 // pred_fallthru
      _
    // Predicated region
    $region26: #{tpu_custom_call.1} parent=1 // pred_check
      _
    $region27: #{tpu_custom_call.1} parent=1 // pred_check_branch
      %162 = sbr.rel (0) target = $region29
    $region28: #{tpu_custom_call.1} parent=1 // pred_region
      %s164 = ssub.s32 32, 32
      %165 = vsyncadd [#allocation9], %s164
      %s167 = sshll.u32 [#allocation8], 4
      %s168 = int_to_ptr.vmem [resolvable:$true] %s167
      %170 = dma.vmem_to_hbm [thread:$0]  %s168, 32, %s4, [#allocation9]
    $region29: #{tpu_custom_call.1} parent=1 // pred_fallthru
      _
    // Predicated region
    $region30: #{tpu_custom_call.1} parent=1 // pred_check
      _
    $region31: #{tpu_custom_call.1} parent=1 // pred_check_branch
      %172 = sbr.rel (0) target = $region33
    $region32: #{tpu_custom_call.1} parent=1 // pred_region
      %173 = dma.done [#allocation4], 32
    $region33: #{tpu_custom_call.1} parent=1 // pred_fallthru
      _
    // Predicated region
    $region34: #{tpu_custom_call.1} parent=1 // pred_check
      _
    $region35: #{tpu_custom_call.1} parent=1 // pred_check_branch
      %175 = sbr.rel (0) target = $region37
    $region36: #{tpu_custom_call.1} parent=1 // pred_region
      %176 = dma.done [#allocation9], 32
    $region37: #{tpu_custom_call.1} parent=1 // pred_fallthru
      _
    %177 = vsyncpa [#allocation3], 1
    %178 = vsyncpa [#allocation6], 1
    %179 = vsyncpa [#allocation4], 1
    %180 = vsyncpa [#allocation9], 1

</llo_original>
